<compile_context>
chip_gen: v5e
topology: v5e:2x2
jax: 0.10.0
libtpu: 0.0.40
codegen_flags: <defaults>
</compile_context>

<pallas_src>
import functools

import numpy as np
import jax
import jax.numpy as jnp
from jax import lax
from jax.experimental import pallas as pl
from jax.experimental.pallas import tpu as pltpu

_BIG = 1e12


# ---------------------------------------------------------------------------
# Pallas kernel: one (batch, entity-type head, query-tile) step
# ---------------------------------------------------------------------------
def _gp_kernel(x_ref, w_ref, b_ref, cs_ref, kmask_ref, addrow_ref, out_ref,
               qr_ref, kr_ref, *, d, block_m, neg_big, compute_dtype,
               resident_w):
    """
    x_ref      : (1, S, H)          hidden states for this batch element
    w_ref      : (E, H, 4d) or (1, H, 4d)   packed [Wq|Wk|Wq_rot|Wk_rot]
    b_ref      : (E, 1, 4d) or (1, 1, 4d)   packed biases (f32)
    cs_ref     : (2, S, 2d)         [0]=[cos|cos], [1]=[sin|sin]
    kmask_ref  : (1, S, 1)          pad * 1/sqrt(d)   (key-axis mask+scale)
    addrow_ref : (1, 1, S)          (pad - 1) * 1e12 / sqrt(d)
    out_ref    : (1, 1, TM, S)      logits tile for this (batch, head, m-tile)
    qr_ref     : (S, d)  VMEM scratch, RoPE'd q (compute dtype)
    kr_ref     : (S, d)  VMEM scratch, RoPE'd + masked/scaled k (compute dtype)
    """
    mi = pl.program_id(2)
    e = pl.program_id(1) if resident_w else 0

    # Project + RoPE once per (batch, head); reused across query tiles.
    @pl.when(mi == 0)
    def _():
        x = x_ref[0]                                             # (S, H)
        # one fused (S,H)@(H,4d) MXU matmul, f32 accumulation, + bias
        p = jnp.dot(x, w_ref[e],
                    preferred_element_type=jnp.float32) + b_ref[e]   # (S,4d)
        # RoPE as a single FMA on the [q|k] slab (rotation folded into weights)
        qk = p[:, :2 * d] * cs_ref[0] + p[:, 2 * d:] * cs_ref[1]     # (S,2d) f32
        qr_ref[...] = qk[:, :d].astype(compute_dtype)
        # fold key-axis pad mask and 1/sqrt(d) into k_r before the big dot
        kr_ref[...] = (qk[:, d:] * kmask_ref[0]).astype(compute_dtype)

    m0 = pl.multiple_of(mi * block_m, block_m)
    q_t = qr_ref[pl.ds(m0, block_m), :]                          # (TM, d)

    # logits[m, n] = <q_m, k_n>  (contract last dims, no explicit transpose)
    logits = lax.dot_general(
        q_t, kr_ref[...],
        dimension_numbers=(((1,), (1,)), ((), ())),
        preferred_element_type=jnp.float32)                      # (TM, S)

    # additive key-pad term + in-kernel strict-lower-triangular mask
    out = logits + addrow_ref[0]                                 # (1,S) bcast
    row = lax.broadcasted_iota(jnp.int32, out.shape, 0) + m0
    col = lax.broadcasted_iota(jnp.int32, out.shape, 1)
    out = jnp.where(row > col, out - neg_big, out)
    out_ref[0, 0] = out.astype(out_ref.dtype)


# ---------------------------------------------------------------------------
# Wrapper (weight preprocessing + pallas_call)
# ---------------------------------------------------------------------------
def global_pointer_forward(last_hidden_state, attention_mask, dense_w, dense_b,
                           ent_type_size, inner_dim, *,
                           compute_dtype=jnp.bfloat16,
                           out_dtype=jnp.float32,
                           block_m=None,
                           weights_resident=None,
                           vmem_limit_bytes=None):
    """Replicates GlobalPointer.forward(...) with span_features_batch=None."""
    B, S, H = last_hidden_state.shape
    E, d = ent_type_size, inner_dim
    inv_sqrt_d = 1.0 / (float(d) ** 0.5)

    if block_m is None or block_m >= S:
        block_m = S
    assert S % block_m == 0, "block_m must divide S"
    m_tiles = S // block_m

    # ---- dense weight preprocessing (once, plain JAX) ------------------------
    # Boundary / GAT token features are all-zero on this path, so only the
    # first H rows of the dense weight matter (zero-concat removed).
    w = dense_w[:H].reshape(H, E, 2, d)        # [..., 0, :]=q, [..., 1, :]=k
    b = dense_b.reshape(E, 2, d)

    def rotate_last(v):
        # v'[..., 2i] = -v[..., 2i+1];  v'[..., 2i+1] = v[..., 2i]
        return jnp.stack([-v[..., 1::2], v[..., ::2]], axis=-1).reshape(v.shape)

    w_rot = rotate_last(w)
    b_rot = rotate_last(b)

    # packed per-head weights (E, H, 4d): [Wq | Wk | Wq_rot | Wk_rot]
    w_all = jnp.concatenate([w[..., 0, :], w[..., 1, :],
                             w_rot[..., 0, :], w_rot[..., 1, :]], axis=-1)
    w_all = jnp.transpose(w_all, (1, 0, 2)).astype(compute_dtype)   # (E,H,4d)
    b_all = jnp.concatenate([b[:, 0], b[:, 1], b_rot[:, 0], b_rot[:, 1]],
                            axis=-1).reshape(E, 1, 4 * d).astype(jnp.float32)

    # ---- RoPE tables, tiled so RoPE is one FMA on the [q|k] slab -------------
    pos = jnp.arange(S, dtype=jnp.float32)[:, None]
    idx = jnp.arange(d // 2, dtype=jnp.float32)
    theta = jnp.power(10000.0, -2.0 * idx / d)
    ang = pos * theta                                        # (S, d/2)
    cos_t = jnp.repeat(jnp.cos(ang), 2, axis=-1)             # (S, d)
    sin_t = jnp.repeat(jnp.sin(ang), 2, axis=-1)             # (S, d)
    cs = jnp.stack([jnp.concatenate([cos_t, cos_t], axis=-1),
                    jnp.concatenate([sin_t, sin_t], axis=-1)], axis=0)  # (2,S,2d)

    # ---- small per-batch mask vectors (no (B,S,S) materialization) -----------
    pad = attention_mask.astype(jnp.float32)                 # (B, S)
    kmask = (pad * inv_sqrt_d).reshape(B, S, 1)              # fold into k_r
    addrow = ((pad - 1.0) * (_BIG * inv_sqrt_d)).reshape(B, 1, S)

    x = last_hidden_state.astype(compute_dtype)

    # ---- weights resident in VMEM when small enough --------------------------
    if weights_resident is None:
        wbytes = E * H * 4 * d * jnp.dtype(compute_dtype).itemsize
        weights_resident = wbytes <= (8 << 20)

    if weights_resident:
        w_spec = pl.BlockSpec((E, H, 4 * d), lambda bi, h, mi: (0, 0, 0))
        b_spec = pl.BlockSpec((E, 1, 4 * d), lambda bi, h, mi: (0, 0, 0))
    else:
        w_spec = pl.BlockSpec((1, H, 4 * d), lambda bi, h, mi: (h, 0, 0))
        b_spec = pl.BlockSpec((1, 1, 4 * d), lambda bi, h, mi: (h, 0, 0))

    kernel = functools.partial(
        _gp_kernel, d=d, block_m=block_m, neg_big=_BIG * inv_sqrt_d,
        compute_dtype=compute_dtype, resident_w=weights_resident)

    out = pl.pallas_call(
        kernel,
        out_shape=jax.ShapeDtypeStruct((B, E, S, S), out_dtype),
        grid_spec=pltpu.PrefetchScalarGridSpec(
            num_scalar_prefetch=0,
            grid=(B, E, m_tiles),
            in_specs=[
                pl.BlockSpec((1, S, H), lambda bi, h, mi: (bi, 0, 0)),      # x
                w_spec,                                                     # W
                b_spec,                                                     # b
                pl.BlockSpec((2, S, 2 * d), lambda bi, h, mi: (0, 0, 0)),   # cos/sin
                pl.BlockSpec((1, S, 1), lambda bi, h, mi: (bi, 0, 0)),      # k mask
                pl.BlockSpec((1, 1, S), lambda bi, h, mi: (bi, 0, 0)),      # add row
            ],
            out_specs=pl.BlockSpec((1, 1, block_m, S),
                                   lambda bi, h, mi: (bi, h, mi, 0)),
            scratch_shapes=[pltpu.VMEM((S, d), compute_dtype),   # q_r
                            pltpu.VMEM((S, d), compute_dtype)],  # k_r (masked)
        ),
        compiler_params=pltpu.CompilerParams(
            dimension_semantics=("parallel", "parallel", "arbitrary"),
            vmem_limit_bytes=vmem_limit_bytes),
    )(x, w_all, b_all, cs, kmask, addrow)
    return out


# ---------------------------------------------------------------------------
# Pure-JAX reference (mirrors the torch code, span_features_batch=None path)
# ---------------------------------------------------------------------------
def global_pointer_reference(last_hidden_state, attention_mask, dense_w, dense_b,
                             ent_type_size, inner_dim):
    B, S, H = last_hidden_state.shape
    d = inner_dim
    combined = jnp.concatenate(
        [last_hidden_state, jnp.zeros_like(last_hidden_state),
         jnp.zeros_like(last_hidden_state)], axis=-1)
    out = combined @ dense_w + dense_b                               # (B,S,E*2d)
    out = out.reshape(B, S, ent_type_size, 2 * d)
    qw, kw = out[..., :d], out[..., d:]

    pos = jnp.arange(S, dtype=jnp.float32)[:, None]
    idx = jnp.arange(d // 2, dtype=jnp.float32)
    theta = jnp.power(10000.0, -2.0 * idx / d)
    ang = pos * theta
    cos_pos = jnp.repeat(jnp.cos(ang), 2, axis=-1)[None, :, None, :]  # (1,S,1,d)
    sin_pos = jnp.repeat(jnp.sin(ang), 2, axis=-1)[None, :, None, :]

    def rotate(x):
        x2 = jnp.stack([-x[..., 1::2], x[..., ::2]], axis=-1).reshape(x.shape)
        return x * cos_pos + x2 * sin_pos

    qw, kw = rotate(qw), rotate(kw)
    logits = jnp.einsum('bmhd,bnhd->bhmn', qw, kw)
    pad = attention_mask.astype(jnp.float32)[:, None, None, :]
    logits = logits * pad - (1.0 - pad) * _BIG
    tril = jnp.tril(jnp.ones((S, S), jnp.float32), -1)[None, None]
    logits = logits - tril * _BIG
    return logits / (d ** 0.5)


if __name__ == "__main__":
    jax.config.update("jax_default_matmul_precision", "float32")

    # ---------------- test 1: tiny shapes consistent with the module ----------
    B, S = 2, 8
    hidden_size = 32          # encoder.config.hidden_size
    hidden_dim = 16           # GAT hidden -> gat_output_dim = 32
    ent_type_size = 4
    inner_dim = 8
    gat_output_dim = hidden_dim * 2
    Dc = hidden_size + hidden_size + gat_output_dim           # dense input dim
    Eo = ent_type_size * inner_dim * 2                        # dense output dim

    key = jax.random.PRNGKey(0)
    k1, k2, k3, k4, k5, k6 = jax.random.split(key, 6)

    last_hidden_state = jax.random.normal(k1, (B, S, hidden_size), jnp.float32)
    dense_w = jax.random.normal(k2, (Dc, Eo), jnp.float32) * 0.05
    dense_b = jax.random.normal(k3, (Eo,), jnp.float32) * 0.05
    attention_mask = jnp.array(
        [[1, 1, 1, 1, 1, 1, 0, 0],
         [1, 1, 1, 1, 1, 1, 1, 1]], dtype=jnp.int32)

    ref = global_pointer_reference(last_hidden_state, attention_mask,
                                   dense_w, dense_b, ent_type_size, inner_dim)

    # f32 MXU operands: close to the torch module's f32 numerics.
    out_f32 = global_pointer_forward(last_hidden_state, attention_mask,
                                     dense_w, dense_b, ent_type_size, inner_dim,
                                     compute_dtype=jnp.float32)
    out_f32 = jax.block_until_ready(out_f32)
    np.testing.assert_allclose(np.asarray(out_f32), np.asarray(ref),
                               rtol=1e-3, atol=1e-3)

    # bf16 MXU operands (f32 accumulation): production default on v5e/v6e/v7x.
    out_bf16 = global_pointer_forward(last_hidden_state, attention_mask,
                                      dense_w, dense_b, ent_type_size, inner_dim)
    out_bf16 = jax.block_until_ready(out_bf16)
    np.testing.assert_allclose(np.asarray(out_bf16), np.asarray(ref),
                               rtol=5e-2, atol=5e-2)

    # ------- test 2: lane-aligned shapes, query-tiled grid, streamed weights --
    B2, S2, H2, E2, d2 = 1, 128, 64, 2, 64
    lhs2 = jax.random.normal(k4, (B2, S2, H2), jnp.float32)
    dense_w2 = jax.random.normal(k5, (3 * H2, E2 * 2 * d2), jnp.float32) * 0.05
    dense_b2 = jax.random.normal(k6, (E2 * 2 * d2,), jnp.float32) * 0.05
    mask2 = (jnp.arange(S2) < 100).astype(jnp.int32)[None, :]

    ref2 = global_pointer_reference(lhs2, mask2, dense_w2, dense_b2, E2, d2)
    out2 = global_pointer_forward(lhs2, mask2, dense_w2, dense_b2, E2, d2,
                                  compute_dtype=jnp.float32,
                                  block_m=64,              # v7x-style m tiling
                                  weights_resident=False)  # per-head weight DMA
    out2 = jax.block_until_ready(out2)
    np.testing.assert_allclose(np.asarray(out2), np.asarray(ref2),
                               rtol=1e-3, atol=1e-3)

    print("KERNEL_OK")
</pallas_src>

<mosaic_0001>
module attributes {stable_mosaic.version = 11 : i64} {
  func.func @_gp_kernel(%arg0: i32, %arg1: i32, %arg2: i32, %arg3: memref<1x8x32xf32, #tpu.memory_space<vmem>>, %arg4: memref<4x32x32xf32, #tpu.memory_space<vmem>>, %arg5: memref<4x1x32xf32, #tpu.memory_space<vmem>>, %arg6: memref<2x8x16xf32, #tpu.memory_space<vmem>>, %arg7: memref<1x8x1xf32, #tpu.memory_space<vmem>>, %arg8: memref<1x1x8xf32, #tpu.memory_space<vmem>>, %arg9: memref<1x1x8x8xf32, #tpu.memory_space<vmem>>, %arg10: memref<8x8xf32, #tpu.memory_space<vmem>>, %arg11: memref<8x8xf32, #tpu.memory_space<vmem>>) attributes {dimension_semantics = [#tpu.dimension_semantics<parallel>, #tpu.dimension_semantics<parallel>, #tpu.dimension_semantics<arbitrary>], iteration_bounds = array<i64: 2, 4, 1>, scalar_prefetch = 0 : i64, scratch_operands = 2 : i64, tpu.core_type = #tpu.core_type<tc>, window_params = [{transform_indices = @transform_0, window_bounds = array<i64: 1, 8, 32>}, {pipeline_mode = #tpu.pipeline_mode<synchronous>, transform_indices = @transform_1, window_bounds = array<i64: 4, 32, 32>}, {pipeline_mode = #tpu.pipeline_mode<synchronous>, transform_indices = @transform_2, window_bounds = array<i64: 4, 1, 32>}, {pipeline_mode = #tpu.pipeline_mode<synchronous>, transform_indices = @transform_3, window_bounds = array<i64: 2, 8, 16>}, {transform_indices = @transform_4, window_bounds = array<i64: 1, 8, 1>}, {transform_indices = @transform_5, window_bounds = array<i64: 1, 1, 8>}, {transform_indices = @transform_6, window_bounds = array<i64: 1, 1, 8, 8>}]} {
    %c0_i32 = arith.constant 0 : i32
    %0 = arith.cmpi eq, %arg2, %c0_i32 : i32
    %1 = arith.extui %0 : i1 to i32
    %c0_i32_0 = arith.constant 0 : i32
    %2 = arith.cmpi ne, %1, %c0_i32_0 : i32
    scf.if %2 {
      %c0_11 = arith.constant 0 : index
      %c0_12 = arith.constant 0 : index
      %c0_13 = arith.constant 0 : index
      %24 = vector.load %arg3[%c0_11, %c0_12, %c0_13] : memref<1x8x32xf32, #tpu.memory_space<vmem>>, vector<1x8x32xf32>
      %25 = vector.shape_cast %24 : vector<1x8x32xf32> to vector<8x32xf32>
      %26 = arith.index_cast %arg1 : i32 to index
      %c0_14 = arith.constant 0 : index
      %c0_15 = arith.constant 0 : index
      %27 = vector.load %arg4[%26, %c0_14, %c0_15] : memref<4x32x32xf32, #tpu.memory_space<vmem>>, vector<1x32x32xf32>
      %28 = vector.shape_cast %27 : vector<1x32x32xf32> to vector<32x32xf32>
      %cst_16 = arith.constant dense<0.000000e+00> : vector<8x32xf32>
      %29 = tpu.matmul %25, %28, %cst_16 {dimension_numbers = #tpu.dot_dimension_numbers<[1], [0], [0], [1], [0, 0, 1, 1], [], []>, precision = #tpu.contract_precision<fp32>} : vector<8x32xf32>, vector<32x32xf32>, vector<8x32xf32> -> vector<8x32xf32>
      %30 = arith.index_cast %arg1 : i32 to index
      %c0_17 = arith.constant 0 : index
      %c0_18 = arith.constant 0 : index
      %31 = vector.load %arg5[%30, %c0_17, %c0_18] : memref<4x1x32xf32, #tpu.memory_space<vmem>>, vector<1x1x32xf32>
      %32 = vector.shape_cast %31 : vector<1x1x32xf32> to vector<1x32xf32>
      %33 = vector.broadcast %32 : vector<1x32xf32> to vector<8x32xf32>
      %34 = arith.addf %29, %33 : vector<8x32xf32>
      %35 = vector.extract_strided_slice %34 {offsets = [0, 0], sizes = [8, 16], strides = [1, 1]} : vector<8x32xf32> to vector<8x16xf32>
      %c0_19 = arith.constant 0 : index
      %c0_20 = arith.constant 0 : index
      %c0_21 = arith.constant 0 : index
      %36 = vector.load %arg6[%c0_19, %c0_20, %c0_21] : memref<2x8x16xf32, #tpu.memory_space<vmem>>, vector<1x8x16xf32>
      %37 = vector.shape_cast %36 : vector<1x8x16xf32> to vector<8x16xf32>
      %38 = arith.mulf %35, %37 : vector<8x16xf32>
      %39 = vector.extract_strided_slice %34 {offsets = [0, 16], sizes = [8, 16], strides = [1, 1]} : vector<8x32xf32> to vector<8x16xf32>
      %c1 = arith.constant 1 : index
      %c0_22 = arith.constant 0 : index
      %c0_23 = arith.constant 0 : index
      %40 = vector.load %arg6[%c1, %c0_22, %c0_23] : memref<2x8x16xf32, #tpu.memory_space<vmem>>, vector<1x8x16xf32>
      %41 = vector.shape_cast %40 : vector<1x8x16xf32> to vector<8x16xf32>
      %42 = arith.mulf %39, %41 : vector<8x16xf32>
      %43 = arith.addf %38, %42 : vector<8x16xf32>
      %44 = vector.extract_strided_slice %43 {offsets = [0, 0], sizes = [8, 8], strides = [1, 1]} : vector<8x16xf32> to vector<8x8xf32>
      %c0_24 = arith.constant 0 : index
      %c0_25 = arith.constant 0 : index
      %45 = vector.load %arg10[%c0_24, %c0_25] : memref<8x8xf32, #tpu.memory_space<vmem>>, vector<8x8xf32>
      tpu.vector_store %arg10[%c0_24, %c0_25], %44 {strides = array<i32>} : memref<8x8xf32, #tpu.memory_space<vmem>>, vector<8x8xf32>,
      %46 = vector.extract_strided_slice %43 {offsets = [0, 8], sizes = [8, 8], strides = [1, 1]} : vector<8x16xf32> to vector<8x8xf32>
      %c0_26 = arith.constant 0 : index
      %c0_27 = arith.constant 0 : index
      %c0_28 = arith.constant 0 : index
      %47 = vector.load %arg7[%c0_26, %c0_27, %c0_28] : memref<1x8x1xf32, #tpu.memory_space<vmem>>, vector<1x8x1xf32>
      %48 = vector.shape_cast %47 : vector<1x8x1xf32> to vector<8x1xf32>
      %49 = vector.broadcast %48 : vector<8x1xf32> to vector<8x8xf32>
      %50 = arith.mulf %46, %49 : vector<8x8xf32>
      %c0_29 = arith.constant 0 : index
      %c0_30 = arith.constant 0 : index
      %51 = vector.load %arg11[%c0_29, %c0_30] : memref<8x8xf32, #tpu.memory_space<vmem>>, vector<8x8xf32>
      tpu.vector_store %arg11[%c0_29, %c0_30], %50 {strides = array<i32>} : memref<8x8xf32, #tpu.memory_space<vmem>>, vector<8x8xf32>,
    } else {
    }
    %c8_i32 = arith.constant 8 : i32
    %3 = arith.muli %arg2, %c8_i32 : i32
    %4 = tpu.assume_multiple %3, 8 : i32
    %5 = arith.index_cast %4 : i32 to index
    %c0 = arith.constant 0 : index
    %6 = vector.load %arg10[%5, %c0] : memref<8x8xf32, #tpu.memory_space<vmem>>, vector<8x8xf32>
    %c0_1 = arith.constant 0 : index
    %c0_2 = arith.constant 0 : index
    %7 = vector.load %arg11[%c0_1, %c0_2] : memref<8x8xf32, #tpu.memory_space<vmem>>, vector<8x8xf32>
    %cst = arith.constant dense<0.000000e+00> : vector<8x8xf32>
    %8 = tpu.matmul %6, %7, %cst {dimension_numbers = #tpu.dot_dimension_numbers<[1], [1], [0], [0], [0, 0, 1, 0], [], []>, precision = #tpu.contract_precision<fp32>} : vector<8x8xf32>, vector<8x8xf32>, vector<8x8xf32> -> vector<8x8xf32>
    %c0_3 = arith.constant 0 : index
    %c0_4 = arith.constant 0 : index
    %c0_5 = arith.constant 0 : index
    %9 = vector.load %arg8[%c0_3, %c0_4, %c0_5] : memref<1x1x8xf32, #tpu.memory_space<vmem>>, vector<1x1x8xf32>
    %10 = vector.shape_cast %9 : vector<1x1x8xf32> to vector<1x8xf32>
    %11 = vector.broadcast %10 : vector<1x8xf32> to vector<8x8xf32>
    %12 = arith.addf %8, %11 : vector<8x8xf32>
    %13 = tpu.iota {dimensions = array<i32: 0>} : vector<8x8xi32>
    %14 = vector.broadcast %4 : i32 to vector<8x8xi32>
    %15 = arith.addi %13, %14 : vector<8x8xi32>
    %16 = tpu.iota {dimensions = array<i32: 1>} : vector<8x8xi32>
    %17 = arith.cmpi sgt, %15, %16 : vector<8x8xi32>
    %cst_6 = arith.constant 3.53553383E+11 : f32
    %18 = vector.broadcast %cst_6 : f32 to vector<8x8xf32>
    %19 = arith.subf %12, %18 : vector<8x8xf32>
    %20 = arith.select %17, %19, %12 : vector<8x8xi1>, vector<8x8xf32>
    %c0_7 = arith.constant 0 : index
    %c0_8 = arith.constant 0 : index
    %c0_9 = arith.constant 0 : index
    %c0_10 = arith.constant 0 : index
    %21 = vector.load %arg9[%c0_7, %c0_8, %c0_9, %c0_10] : memref<1x1x8x8xf32, #tpu.memory_space<vmem>>, vector<1x1x8x8xf32>
    %22 = vector.shape_cast %21 : vector<1x1x8x8xf32> to vector<8x8xf32>
    %23 = vector.shape_cast %20 : vector<8x8xf32> to vector<1x1x8x8xf32>
    tpu.vector_store %arg9[%c0_7, %c0_8, %c0_9, %c0_10], %23 {strides = array<i32>} : memref<1x1x8x8xf32, #tpu.memory_space<vmem>>, vector<1x1x8x8xf32>,
    return
  }
  func.func @transform_0(%arg0: i32, %arg1: i32, %arg2: i32) -> (i32, i32, i32) {
    %c0_i32 = arith.constant 0 : i32
    %c0_i32_0 = arith.constant 0 : i32
    %c0_i32_1 = arith.constant 0 : i32
    return %arg0, %c0_i32, %c0_i32_0 : i32, i32, i32
  }
  func.func @transform_1(%arg0: i32, %arg1: i32, %arg2: i32) -> (i32, i32, i32) {
    %c0_i32 = arith.constant 0 : i32
    %c0_i32_0 = arith.constant 0 : i32
    %c0_i32_1 = arith.constant 0 : i32
    %c0_i32_2 = arith.constant 0 : i32
    return %c0_i32, %c0_i32_0, %c0_i32_1 : i32, i32, i32
  }
  func.func @transform_2(%arg0: i32, %arg1: i32, %arg2: i32) -> (i32, i32, i32) {
    %c0_i32 = arith.constant 0 : i32
    %c0_i32_0 = arith.constant 0 : i32
    %c0_i32_1 = arith.constant 0 : i32
    %c0_i32_2 = arith.constant 0 : i32
    return %c0_i32, %c0_i32_0, %c0_i32_1 : i32, i32, i32
  }
  func.func @transform_3(%arg0: i32, %arg1: i32, %arg2: i32) -> (i32, i32, i32) {
    %c0_i32 = arith.constant 0 : i32
    %c0_i32_0 = arith.constant 0 : i32
    %c0_i32_1 = arith.constant 0 : i32
    %c0_i32_2 = arith.constant 0 : i32
    return %c0_i32, %c0_i32_0, %c0_i32_1 : i32, i32, i32
  }
  func.func @transform_4(%arg0: i32, %arg1: i32, %arg2: i32) -> (i32, i32, i32) {
    %c0_i32 = arith.constant 0 : i32
    %c0_i32_0 = arith.constant 0 : i32
    %c0_i32_1 = arith.constant 0 : i32
    return %arg0, %c0_i32, %c0_i32_0 : i32, i32, i32
  }
  func.func @transform_5(%arg0: i32, %arg1: i32, %arg2: i32) -> (i32, i32, i32) {
    %c0_i32 = arith.constant 0 : i32
    %c0_i32_0 = arith.constant 0 : i32
    %c0_i32_1 = arith.constant 0 : i32
    return %arg0, %c0_i32, %c0_i32_0 : i32, i32, i32
  }
  func.func @transform_6(%arg0: i32, %arg1: i32, %arg2: i32) -> (i32, i32, i32, i32) {
    %c0_i32 = arith.constant 0 : i32
    %c0_i32_0 = arith.constant 0 : i32
    return %arg0, %arg1, %arg2, %c0_i32 : i32, i32, i32, i32
  }
}

</mosaic_0001>

<llo_original>
// kernel: tpu_custom_call.1
$region0: #{tpu_custom_call.1}
  #allocation0 [shape = 'u32[]', space=smem, size = 0x4, offset = 0x4, fixed_abs, tag = 'smem constant byte address 0x4 - core index']
  #allocation1 [shape = 'u32[72,128]{1,0:T(1,128)}', space=vmem, size = 0x9000, scoped, tag = 'internal scratch']
  #allocation2 [shape = 'f32[8,8]{1,0:T(8,128)}', space=vmem, size = 0x1000, scoped, tag = 'scratch operand']
  #allocation3 [shape = 'f32[8,8]{1,0:T(8,128)}', space=vmem, size = 0x1000, scoped, tag = 'scratch operand']
  %s0 = inlined_call_operand.vmem [shape: f32[2,8,32], index: 0, kind: input, shape index: {}]
  %s1 = inlined_call_operand.hbm [shape: f32[4,32,32], index: 1, kind: input, shape index: {}]
  %s2 = inlined_call_operand.hbm [shape: f32[4,1,32], index: 2, kind: input, shape index: {}]
  %s3 = inlined_call_operand.hbm [shape: f32[2,8,16], index: 3, kind: input, shape index: {}]
  %s4 = inlined_call_operand.vmem [shape: f32[2,8,1], index: 4, kind: input, shape index: {}]
  %s5 = inlined_call_operand.vmem [shape: f32[2,1,8], index: 5, kind: input, shape index: {}]
  %s6 = inlined_call_operand.hbm [shape: f32[2,4,8,8], index: 6, kind: output, shape index: {}]
  %s7 = sld [smem:[#allocation0]]
  $region73: #{tpu_custom_call.1} parent=0
    _
  %s9 = ssub.s32 1, %s7
  %s10 = scalar_select 0, %s9, %s7
  $region1: #{tpu_custom_call.1} parent=0
    #allocation4 [shape = 'u8[65536]{0}', space=vmem, size = 0x10000, scoped, tag = 'input window, operand 1, single buffered']
    #allocation5 [shape = 's32[2]{0}', space=sflag, size = 0x8, scoped, tag = 'scoped memory for tpu_custom_call.1']
    #allocation6 [shape = 's32[2]{0}', space=sflag, size = 0x8, scoped, tag = 'scoped memory for tpu_custom_call.1']
    #allocation7 [shape = 'u8[2048]{0}', space=vmem, size = 0x800, scoped, tag = 'input window, operand 2, single buffered']
    #allocation8 [shape = 's32[1]{0}', space=sflag, size = 0x4, scoped, tag = 'scoped memory for tpu_custom_call.1']
    #allocation9 [shape = 'u8[8192]{0}', space=vmem, size = 0x2000, scoped, tag = 'input window, operand 3, single buffered']
    #allocation10 [shape = 'u8[8192]{0}', space=vmem, size = 0x2000, scoped, tag = 'output window, operand 0']
    %11 = vsyncpa [#allocation5], 0
    %12 = vsyncpa [#allocation8], 0
    %13 = vsyncpa [#allocation6], 0
    %s14 = scalar_lea.sflag [#allocation6], 1
    %15 = vsyncpa %s14, 0
    loop: start=0, step=1, limit=10
    $region2: #{tpu_custom_call.1} parent=1 // loop_pre_header
      _
    $region3: #{tpu_custom_call.1} parent=1 // loop_header
      %s17 = sphi 0, %s21
      %p18 = scmp.ge.s32.totalorder %s17, 10
      %s24 = sphi 0, %s43
      %s25 = sphi 0, %s39
      %s26 = sphi 0, %s35
      %s27 = sphi 0, %s24
      %s28 = sphi 0, %s25
      %s29 = sphi 0, %s26
      %s30 = sphi 0, %s27
      %s31 = sphi 0, %s28
      %s32 = sphi 0, %s29
      %s46 = sphi 0, %s48
      %s49 = sphi 0, %s46
      %s50 = sphi 0, %s49
      %s66 = sphi 0, %s50
      %s70 = sphi 0, %s70
      %s72 = sphi 0, %s70
      %s73 = sphi 0, %s72
      %s87 = sphi 0, %s73
      %s91 = sphi 0, %s91
      %s93 = sphi 0, %s91
      %s94 = sphi 0, %s93
      %s108 = sphi 0, %s94
      %s112 = sphi 0, %s112
      %s114 = sphi 0, %s112
      %s115 = sphi 0, %s114
      %s129 = sphi 0, %s115
      %s135 = sphi 0, %s137
      %s138 = sphi 0, %s135
      %s139 = sphi 0, %s138
      %s155 = sphi 0, %s139
      %s161 = sphi 0, %s163
      %s164 = sphi 0, %s161
      %s165 = sphi 0, %s164
      %s181 = sphi 0, %s165
      %s191 = sphi 0, %s193
      %s194 = sphi 0, %s191
      %s195 = sphi 0, %s194
      %s211 = sphi 0, %s195
    $region4: #{tpu_custom_call.1} parent=1 // loop_header_branch
      %20 = sbr.rel (%p18) target = $region8
    $region5: #{tpu_custom_call.1} parent=1 // loop_body
      %s22 = ssub.s32 %s17, 1
      %s23 = ssub.s32 %s17, 2
      %s33 = sadd.s32 1, %s26
      %p34 = scmp.ge.s32.totalorder %s33, 1
      %s35 = scalar_select %p34, 0, %s33
      %s36 = sadd.s32 1, %s25
      %s37 = scalar_select %p34, %s36, %s25
      %p38 = scmp.ge.s32.totalorder %s37, 4
      %s39 = scalar_select %p38, 0, %s37
      %s40 = sadd.s32 1, %s24
      %s41 = scalar_select %p38, %s40, %s24
      %p42 = scmp.ge.s32.totalorder %s41, 2
      %s43 = scalar_select %p42, 0, %s41
      %s44 = ssub.s32 %s24, %s43
      %p45 = scmp.eq.s32.totalorder %s44, 0
      %s47 = sadd.s32 %s46, 1
      %s48 = scalar_select %p45, %s46, %s47
      %p51 = pneg %p45
      %p52 = scmp.eq.s32.totalorder %s17, 7
      %p53 = por %p51, %p52
      %p54 = scmp.ne.s32.totalorder %s46, %s49
      %p55 = scmp.eq.s32.totalorder %s17, 0
      %p56 = por %p54, %p55
      %p57 = scmp.ne.s32.totalorder %s46, %s49
      %p58 = scmp.eq.s32.totalorder %s22, 7
      %p59 = por %p57, %p58
      %p60 = scmp.ne.s32.totalorder %s49, %s50
      %p61 = scmp.eq.s32.totalorder %s22, 0
      %p62 = por %p60, %p61
      %p63 = scmp.ne.s32.totalorder %s49, %s50
      %p64 = scmp.eq.s32.totalorder %s23, 7
      %p65 = por %p63, %p64
      %p67 = scmp.ne.s32.totalorder %s50, %s66
      %p68 = scmp.eq.s32.totalorder %s23, 0
      %p69 = por %p67, %p68
      %s71 = sadd.s32 %s70, 1
      %p74 = scmp.eq.s32.totalorder %s17, 7
      %p75 = scmp.ne.s32.totalorder %s70, %s72
      %p76 = scmp.eq.s32.totalorder %s17, 0
      %p77 = por %p75, %p76
      %p78 = scmp.ne.s32.totalorder %s70, %s72
      %p79 = scmp.eq.s32.totalorder %s22, 7
      %p80 = por %p78, %p79
      %p81 = scmp.ne.s32.totalorder %s72, %s73
      %p82 = scmp.eq.s32.totalorder %s22, 0
      %p83 = por %p81, %p82
      %p84 = scmp.ne.s32.totalorder %s72, %s73
      %p85 = scmp.eq.s32.totalorder %s23, 7
      %p86 = por %p84, %p85
      %p88 = scmp.ne.s32.totalorder %s73, %s87
      %p89 = scmp.eq.s32.totalorder %s23, 0
      %p90 = por %p88, %p89
      %s92 = sadd.s32 %s91, 1
      %p95 = scmp.eq.s32.totalorder %s17, 7
      %p96 = scmp.ne.s32.totalorder %s91, %s93
      %p97 = scmp.eq.s32.totalorder %s17, 0
      %p98 = por %p96, %p97
      %p99 = scmp.ne.s32.totalorder %s91, %s93
      %p100 = scmp.eq.s32.totalorder %s22, 7
      %p101 = por %p99, %p100
      %p102 = scmp.ne.s32.totalorder %s93, %s94
      %p103 = scmp.eq.s32.totalorder %s22, 0
      %p104 = por %p102, %p103
      %p105 = scmp.ne.s32.totalorder %s93, %s94
      %p106 = scmp.eq.s32.totalorder %s23, 7
      %p107 = por %p105, %p106
      %p109 = scmp.ne.s32.totalorder %s94, %s108
      %p110 = scmp.eq.s32.totalorder %s23, 0
      %p111 = por %p109, %p110
      %s113 = sadd.s32 %s112, 1
      %p116 = scmp.eq.s32.totalorder %s17, 7
      %p117 = scmp.ne.s32.totalorder %s112, %s114
      %p118 = scmp.eq.s32.totalorder %s17, 0
      %p119 = por %p117, %p118
      %p120 = scmp.ne.s32.totalorder %s112, %s114
      %p121 = scmp.eq.s32.totalorder %s22, 7
      %p122 = por %p120, %p121
      %p123 = scmp.ne.s32.totalorder %s114, %s115
      %p124 = scmp.eq.s32.totalorder %s22, 0
      %p125 = por %p123, %p124
      %p126 = scmp.ne.s32.totalorder %s114, %s115
      %p127 = scmp.eq.s32.totalorder %s23, 7
      %p128 = por %p126, %p127
      %p130 = scmp.ne.s32.totalorder %s115, %s129
      %p131 = scmp.eq.s32.totalorder %s23, 0
      %p132 = por %p130, %p131
      %s133 = ssub.s32 %s24, %s43
      %p134 = scmp.eq.s32.totalorder %s133, 0
      %s136 = sadd.s32 %s135, 1
      %s137 = scalar_select %p134, %s135, %s136
      %p140 = pneg %p134
      %p141 = scmp.eq.s32.totalorder %s17, 7
      %p142 = por %p140, %p141
      %p143 = scmp.ne.s32.totalorder %s135, %s138
      %p144 = scmp.eq.s32.totalorder %s17, 0
      %p145 = por %p143, %p144
      %p146 = scmp.ne.s32.totalorder %s135, %s138
      %p147 = scmp.eq.s32.totalorder %s22, 7
      %p148 = por %p146, %p147
      %p149 = scmp.ne.s32.totalorder %s138, %s139
      %p150 = scmp.eq.s32.totalorder %s22, 0
      %p151 = por %p149, %p150
      %p152 = scmp.ne.s32.totalorder %s138, %s139
      %p153 = scmp.eq.s32.totalorder %s23, 7
      %p154 = por %p152, %p153
      %p156 = scmp.ne.s32.totalorder %s139, %s155
      %p157 = scmp.eq.s32.totalorder %s23, 0
      %p158 = por %p156, %p157
      %s159 = ssub.s32 %s24, %s43
      %p160 = scmp.eq.s32.totalorder %s159, 0
      %s162 = sadd.s32 %s161, 1
      %s163 = scalar_select %p160, %s161, %s162
      %p166 = pneg %p160
      %p167 = scmp.eq.s32.totalorder %s17, 7
      %p168 = por %p166, %p167
      %p169 = scmp.ne.s32.totalorder %s161, %s164
      %p170 = scmp.eq.s32.totalorder %s17, 0
      %p171 = por %p169, %p170
      %p172 = scmp.ne.s32.totalorder %s161, %s164
      %p173 = scmp.eq.s32.totalorder %s22, 7
      %p174 = por %p172, %p173
      %p175 = scmp.ne.s32.totalorder %s164, %s165
      %p176 = scmp.eq.s32.totalorder %s22, 0
      %p177 = por %p175, %p176
      %p178 = scmp.ne.s32.totalorder %s164, %s165
      %p179 = scmp.eq.s32.totalorder %s23, 7
      %p180 = por %p178, %p179
      %p182 = scmp.ne.s32.totalorder %s165, %s181
      %p183 = scmp.eq.s32.totalorder %s23, 0
      %p184 = por %p182, %p183
      %s185 = ssub.s32 %s24, %s43
      %s186 = ssub.s32 %s25, %s39
      %s187 = sor.u32 %s185, %s186
      %s188 = ssub.s32 %s26, %s35
      %s189 = sor.u32 %s187, %s188
      %p190 = scmp.eq.s32.totalorder %s189, 0
      %s192 = sadd.s32 %s191, 1
      %s193 = scalar_select %p190, %s191, %s192
      %p196 = pneg %p190
      %p197 = scmp.eq.s32.totalorder %s17, 7
      %p198 = por %p196, %p197
      %p199 = scmp.ne.s32.totalorder %s191, %s194
      %p200 = scmp.eq.s32.totalorder %s17, 0
      %p201 = por %p199, %p200
      %p202 = scmp.ne.s32.totalorder %s191, %s194
      %p203 = scmp.eq.s32.totalorder %s22, 7
      %p204 = por %p202, %p203
      %p205 = scmp.ne.s32.totalorder %s194, %s195
      %p206 = scmp.eq.s32.totalorder %s22, 0
      %p207 = por %p205, %p206
      %p208 = scmp.ne.s32.totalorder %s194, %s195
      %p209 = scmp.eq.s32.totalorder %s23, 7
      %p210 = por %p208, %p209
      %p212 = scmp.ne.s32.totalorder %s195, %s211
      %p213 = scmp.eq.s32.totalorder %s23, 0
      %p214 = por %p212, %p213
      %p215 = scmp.le.s32.totalorder 1, %s17
      %p216 = scmp.lt.s32.totalorder %s17, 9
      %p217 = pnand %p215, %p216
      %p218 = pneg %p217
      // Predicated region
      $region9: #{tpu_custom_call.1} parent=5 // pred_check
        _
      $region10: #{tpu_custom_call.1} parent=5 // pred_check_branch
        %220 = sbr.rel (%p217) target = $region12
      $region11: #{tpu_custom_call.1} parent=5 // pred_region
        %s221 = ssub.s32 %s17, 1
        // Predicated region
        $region13: #{tpu_custom_call.1} parent=11 // pred_check
          %p222 = pneg %p83
        $region14: #{tpu_custom_call.1} parent=11 // pred_check_branch
          %224 = sbr.rel (%p222) target = $region16
        $region15: #{tpu_custom_call.1} parent=11 // pred_region
          %226 = vsyncadd [#allocation5], 0
          %s227 = sshll.u32 %s1, 4
          %s228 = int_to_ptr.hbm [resolvable:$true] %s227
          %s229 = sshll.u32 [#allocation4], 4
          %s230 = int_to_ptr.vmem [resolvable:$true] %s229
          %235 = dma.hbm_to_vmem [thread:$0]  %s228, 2048, %s230, [#allocation5], 128, 128, 8
        $region16: #{tpu_custom_call.1} parent=11 // pred_fallthru
          _
        // Predicated region
        $region17: #{tpu_custom_call.1} parent=11 // pred_check
          %p236 = pneg %p104
        $region18: #{tpu_custom_call.1} parent=11 // pred_check_branch
          %238 = sbr.rel (%p236) target = $region20
        $region19: #{tpu_custom_call.1} parent=11 // pred_region
          %240 = vsyncadd [#allocation8], 0
          %s241 = sshll.u32 %s2, 4
          %s242 = int_to_ptr.hbm [resolvable:$true] %s241
          %s243 = sshll.u32 [#allocation7], 4
          %s244 = int_to_ptr.vmem [resolvable:$true] %s243
          %249 = dma.hbm_to_vmem [thread:$0]  %s242, 64, %s244, [#allocation8], 16, 16, 1
        $region20: #{tpu_custom_call.1} parent=11 // pred_fallthru
          _
        // Predicated region
        $region21: #{tpu_custom_call.1} parent=11 // pred_check
          %p250 = pneg %p125
        $region22: #{tpu_custom_call.1} parent=11 // pred_check_branch
          %252 = sbr.rel (%p250) target = $region24
        $region23: #{tpu_custom_call.1} parent=11 // pred_region
          %254 = vsyncadd [#allocation8], 0
          %s255 = sshll.u32 %s3, 4
          %s256 = int_to_ptr.hbm [resolvable:$true] %s255
          %s257 = sshll.u32 [#allocation9], 4
          %s258 = int_to_ptr.vmem [resolvable:$true] %s257
          %263 = dma.hbm_to_vmem [thread:$0]  %s256, 256, %s258, [#allocation8], 128, 128, 8
        $region24: #{tpu_custom_call.1} parent=11 // pred_fallthru
          _
      $region12: #{tpu_custom_call.1} parent=5 // pred_fallthru
        _
      %p264 = scmp.lt.s32.totalorder %s17, 8
      // Predicated region
      $region25: #{tpu_custom_call.1} parent=5 // pred_check
        %p265 = pneg %p264
      $region26: #{tpu_custom_call.1} parent=5 // pred_check_branch
        %267 = sbr.rel (%p265) target = $region28
      $region27: #{tpu_custom_call.1} parent=5 // pred_region
        // Predicated region
        $region29: #{tpu_custom_call.1} parent=27 // pred_check
          %p268 = pneg %p56
        $region30: #{tpu_custom_call.1} parent=27 // pred_check_branch
          %270 = sbr.rel (%p268) target = $region32
        $region31: #{tpu_custom_call.1} parent=27 // pred_region
          %p271 = scmp.lt.s32.totalorder %s24, 1
          %s272 = scalar_select %p271, %s24, 1
          %s273 = smul.addr %s272, 8
          %s274 = scalar_lea.vmem %s0, %s273
        $region32: #{tpu_custom_call.1} parent=27 // pred_fallthru
          _
        // Predicated region
        $region33: #{tpu_custom_call.1} parent=27 // pred_check
          %p275 = pneg %p145
        $region34: #{tpu_custom_call.1} parent=27 // pred_check_branch
          %277 = sbr.rel (%p275) target = $region36
        $region35: #{tpu_custom_call.1} parent=27 // pred_region
          %p278 = scmp.lt.s32.totalorder %s24, 1
          %s279 = scalar_select %p278, %s24, 1
          %s280 = smul.addr %s279, 8
          %s281 = scalar_lea.vmem %s4, %s280
        $region36: #{tpu_custom_call.1} parent=27 // pred_fallthru
          _
        // Predicated region
        $region37: #{tpu_custom_call.1} parent=27 // pred_check
          %p282 = pneg %p171
        $region38: #{tpu_custom_call.1} parent=27 // pred_check_branch
          %284 = sbr.rel (%p282) target = $region40
        $region39: #{tpu_custom_call.1} parent=27 // pred_region
          %p285 = scmp.lt.s32.totalorder %s24, 1
          %s286 = scalar_select %p285, %s24, 1
          %s287 = scalar_lea.vmem %s5, %s286
        $region40: #{tpu_custom_call.1} parent=27 // pred_fallthru
          _
      $region28: #{tpu_custom_call.1} parent=5 // pred_fallthru
        _
      %p288 = scmp.le.s32.totalorder 1, %s17
      %p289 = scmp.lt.s32.totalorder %s17, 9
      %p290 = pnand %p288, %p289
      %p291 = pneg %p290
      // Predicated region
      $region41: #{tpu_custom_call.1} parent=5 // pred_check
        _
      $region42: #{tpu_custom_call.1} parent=5 // pred_check_branch
        %293 = sbr.rel (%p290) target = $region44
      $region43: #{tpu_custom_call.1} parent=5 // pred_region
        %s294 = ssub.s32 %s17, 1
        // Predicated region
        $region45: #{tpu_custom_call.1} parent=43 // pred_check
          %p295 = pneg %p83
        $region46: #{tpu_custom_call.1} parent=43 // pred_check_branch
          %297 = sbr.rel (%p295) target = $region48
        $region47: #{tpu_custom_call.1} parent=43 // pred_region
          %299 = dma.done [#allocation5], 2048
        $region48: #{tpu_custom_call.1} parent=43 // pred_fallthru
          _
        // Predicated region
        $region49: #{tpu_custom_call.1} parent=43 // pred_check
          %p300 = pneg %p104
        $region50: #{tpu_custom_call.1} parent=43 // pred_check_branch
          %302 = sbr.rel (%p300) target = $region52
        $region51: #{tpu_custom_call.1} parent=43 // pred_region
          %304 = dma.done [#allocation8], 64
        $region52: #{tpu_custom_call.1} parent=43 // pred_fallthru
          _
        // Predicated region
        $region53: #{tpu_custom_call.1} parent=43 // pred_check
          %p305 = pneg %p125
        $region54: #{tpu_custom_call.1} parent=43 // pred_check_branch
          %307 = sbr.rel (%p305) target = $region56
        $region55: #{tpu_custom_call.1} parent=43 // pred_region
          %309 = dma.done [#allocation8], 256
        $region56: #{tpu_custom_call.1} parent=43 // pred_fallthru
          _
        %p310 = scmp.lt.s32.totalorder %s27, 1
        %s311 = scalar_select %p310, %s27, 1
        %s312 = smul.addr %s311, 8
        %s313 = scalar_lea.vmem %s0, %s312
        %p314 = pneg %p62
        %p315 = pneg %p59
        %p316 = pneg %p83
        %p317 = pneg %p80
        %p318 = pneg %p104
        %p319 = pneg %p101
        %p320 = pneg %p125
        %p321 = pneg %p122
        %p322 = scmp.lt.s32.totalorder %s27, 1
        %s323 = scalar_select %p322, %s27, 1
        %s324 = smul.addr %s323, 8
        %s325 = scalar_lea.vmem %s4, %s324
        %p326 = pneg %p151
        %p327 = pneg %p148
        %p328 = scmp.lt.s32.totalorder %s27, 1
        %s329 = scalar_select %p328, %s27, 1
        %s330 = scalar_lea.vmem %s5, %s329
        %p331 = pneg %p177
        %p332 = pneg %p174
        %p333 = pneg %p207
        %p334 = pneg %p204
        %s335 = sand.u32 %s194, 1
        %s336 = scalar_lea.sflag [#allocation6], %s335
        %s337 = sand.u32 %s194, 1
        %s338 = smul.addr %s337, 8
        %s339 = scalar_lea.vmem [#allocation10], %s338
        %p340 = scmp.lt.s32.totalorder %s27, 1
        %s341 = scalar_select %p340, %s27, 1
        %s342 = smul.addr %s341, 8
        %s343 = scalar_lea.vmem %s0, %s342
        %p344 = scmp.lt.s32.totalorder %s27, 1
        %s345 = scalar_select %p344, %s27, 1
        %s346 = smul.addr %s345, 8
        %s347 = scalar_lea.vmem %s4, %s346
        %p348 = scmp.lt.s32.totalorder %s27, 1
        %s349 = scalar_select %p348, %s27, 1
        %s350 = scalar_lea.vmem %s5, %s349
        %p351 = scmp.eq.s32.totalorder %s29, 0
        // Predicated region
        $region57: #{tpu_custom_call.1} parent=43 // pred_check
          %p352 = pneg %p351
        $region58: #{tpu_custom_call.1} parent=43 // pred_check_branch
          %354 = sbr.rel (%p352) target = $region60
        $region59: #{tpu_custom_call.1} parent=43 // pred_region
          %v355 = vld [vmem:[%s343] sm:$0xff]
          %s356 = smul.u32 %s28, 32
          %s357 = scalar_lea.vmem [#allocation4], %s356
          %v358 = vld [vmem:[%s357] sm:$0xff]
          %v359 = vld [vmem:[%s357 + $0x8] sm:$0xff]
          %v360 = vld [vmem:[%s357 + $0x10] sm:$0xff]
          %v361 = vld [vmem:[%s357 + $0x18] sm:$0xff]
          %s362 = scalar_lea.vmem [#allocation7], %s28
          %v363 = vld [vmem:[%s362] sm:$0x1]
          %v365 = vperm.slane %v363, 0
          %vm367 = vcmask 261120
          %v369 = vsel %vm367, %v355, 0
          %371 = vmatpush.msra.mxu0 0.0
          %372 = vmatpush.msra.mxu0 0.0
          %373 = vmatpush.msra.mxu0 0.0
          %374 = vmatpush.msra.mxu0 0.0
          %375 = vmatpush.msra.mxu0 0.0
          %376 = vmatpush.msra.mxu0 0.0
          %377 = vmatpush.msra.mxu0 0.0
          %378 = vmatpush.msra.mxu0 0.0
          %379 = vmatpush.msra.mxu0 0.0
          %380 = vmatpush.msra.mxu0 0.0
          %381 = vmatpush.msra.mxu0 0.0
          %382 = vmatpush.msra.mxu0 0.0
          %v383 = vand.u32 %v361, 4294901760
          %384 = vmatpush.msra.mxu0 %v383
          %v385 = vand.u32 %v360, 4294901760
          %386 = vmatpush.msra.mxu0 %v385
          %v387 = vand.u32 %v359, 4294901760
          %388 = vmatpush.msra.mxu0 %v387
          %v389 = vand.u32 %v358, 4294901760
          %390 = vmatpush.msra.mxu0 %v389
          %v391 = vand.u32 %v369, 4294901760
          %v392 = vsub.f32 %v369, %v391
          %v393 = vand.u32 %v392, 4294901760
          %v394 = vsub.f32 %v392, %v393
          %v395 = vand.u32 %v394, 4294901760
          %396 = vmatmul.f32.gmra.mxu0 %v395
          %v397 = vpop.f32.mrf.mxu0
          %v398 = vadd.f32 %v365, %v397
          %399 = vdwg.mxu0
          %400 = vmatpush.msra.mxu0 0.0
          %401 = vmatpush.msra.mxu0 0.0
          %402 = vmatpush.msra.mxu0 0.0
          %403 = vmatpush.msra.mxu0 0.0
          %404 = vmatpush.msra.mxu0 0.0
          %405 = vmatpush.msra.mxu0 0.0
          %406 = vmatpush.msra.mxu0 0.0
          %407 = vmatpush.msra.mxu0 0.0
          %408 = vmatpush.msra.mxu0 0.0
          %409 = vmatpush.msra.mxu0 0.0
          %410 = vmatpush.msra.mxu0 0.0
          %411 = vmatpush.msra.mxu0 0.0
          %v412 = vand.u32 %v361, 4294901760
          %v413 = vsub.f32 %v361, %v412
          %v414 = vand.u32 %v413, 4294901760
          %v415 = vsub.f32 %v413, %v414
          %v416 = vand.u32 %v415, 4294901760
          %417 = vmatpush.msra.mxu0 %v416
          %v418 = vand.u32 %v360, 4294901760
          %v419 = vsub.f32 %v360, %v418
          %v420 = vand.u32 %v419, 4294901760
          %v421 = vsub.f32 %v419, %v420
          %v422 = vand.u32 %v421, 4294901760
          %423 = vmatpush.msra.mxu0 %v422
          %v424 = vand.u32 %v359, 4294901760
          %v425 = vsub.f32 %v359, %v424
          %v426 = vand.u32 %v425, 4294901760
          %v427 = vsub.f32 %v425, %v426
          %v428 = vand.u32 %v427, 4294901760
          %429 = vmatpush.msra.mxu0 %v428
          %v430 = vand.u32 %v358, 4294901760
          %v431 = vsub.f32 %v358, %v430
          %v432 = vand.u32 %v431, 4294901760
          %v433 = vsub.f32 %v431, %v432
          %v434 = vand.u32 %v433, 4294901760
          %435 = vmatpush.msra.mxu0 %v434
          %v436 = vand.u32 %v369, 4294901760
          %437 = vmatmul.f32.gmra.mxu0 %v436
          %v438 = vpop.f32.mrf.mxu0
          %v439 = vadd.f32 %v398, %v438
          %440 = vdwg.mxu0
          %441 = vmatpush.msra.mxu0 0.0
          %442 = vmatpush.msra.mxu0 0.0
          %443 = vmatpush.msra.mxu0 0.0
          %444 = vmatpush.msra.mxu0 0.0
          %445 = vmatpush.msra.mxu0 0.0
          %446 = vmatpush.msra.mxu0 0.0
          %447 = vmatpush.msra.mxu0 0.0
          %448 = vmatpush.msra.mxu0 0.0
          %449 = vmatpush.msra.mxu0 0.0
          %450 = vmatpush.msra.mxu0 0.0
          %451 = vmatpush.msra.mxu0 0.0
          %452 = vmatpush.msra.mxu0 0.0
          %v453 = vand.u32 %v361, 4294901760
          %v454 = vsub.f32 %v361, %v453
          %455 = vmatpush.msra.mxu0 %v454
          %v456 = vand.u32 %v360, 4294901760
          %v457 = vsub.f32 %v360, %v456
          %458 = vmatpush.msra.mxu0 %v457
          %v459 = vand.u32 %v359, 4294901760
          %v460 = vsub.f32 %v359, %v459
          %461 = vmatpush.msra.mxu0 %v460
          %v462 = vand.u32 %v358, 4294901760
          %v463 = vsub.f32 %v358, %v462
          %464 = vmatpush.msra.mxu0 %v463
          %v465 = vand.u32 %v369, 4294901760
          %v466 = vsub.f32 %v369, %v465
          %467 = vmatmul.f32.gmra.mxu0 %v466
          %v468 = vpop.f32.mrf.mxu0
          %v469 = vadd.f32 %v439, %v468
          %470 = vdwg.mxu0
          %471 = vmatpush.msra.mxu0 0.0
          %472 = vmatpush.msra.mxu0 0.0
          %473 = vmatpush.msra.mxu0 0.0
          %474 = vmatpush.msra.mxu0 0.0
          %475 = vmatpush.msra.mxu0 0.0
          %476 = vmatpush.msra.mxu0 0.0
          %477 = vmatpush.msra.mxu0 0.0
          %478 = vmatpush.msra.mxu0 0.0
          %479 = vmatpush.msra.mxu0 0.0
          %480 = vmatpush.msra.mxu0 0.0
          %481 = vmatpush.msra.mxu0 0.0
          %482 = vmatpush.msra.mxu0 0.0
          %v483 = vand.u32 %v361, 4294901760
          %484 = vmatpush.msra.mxu0 %v483
          %v485 = vand.u32 %v360, 4294901760
          %486 = vmatpush.msra.mxu0 %v485
          %v487 = vand.u32 %v359, 4294901760
          %488 = vmatpush.msra.mxu0 %v487
          %v489 = vand.u32 %v358, 4294901760
          %490 = vmatpush.msra.mxu0 %v489
          %v491 = vand.u32 %v369, 4294901760
          %v492 = vsub.f32 %v369, %v491
          %v493 = vand.u32 %v492, 4294901760
          %494 = vmatmul.f32.gmra.mxu0 %v493
          %v495 = vpop.f32.mrf.mxu0
          %v496 = vadd.f32 %v469, %v495
          %497 = vdwg.mxu0
          %498 = vmatpush.msra.mxu0 0.0
          %499 = vmatpush.msra.mxu0 0.0
          %500 = vmatpush.msra.mxu0 0.0
          %501 = vmatpush.msra.mxu0 0.0
          %502 = vmatpush.msra.mxu0 0.0
          %503 = vmatpush.msra.mxu0 0.0
          %504 = vmatpush.msra.mxu0 0.0
          %505 = vmatpush.msra.mxu0 0.0
          %506 = vmatpush.msra.mxu0 0.0
          %507 = vmatpush.msra.mxu0 0.0
          %508 = vmatpush.msra.mxu0 0.0
          %509 = vmatpush.msra.mxu0 0.0
          %v510 = vand.u32 %v361, 4294901760
          %v511 = vsub.f32 %v361, %v510
          %v512 = vand.u32 %v511, 4294901760
          %513 = vmatpush.msra.mxu0 %v512
          %v514 = vand.u32 %v360, 4294901760
          %v515 = vsub.f32 %v360, %v514
          %v516 = vand.u32 %v515, 4294901760
          %517 = vmatpush.msra.mxu0 %v516
          %v518 = vand.u32 %v359, 4294901760
          %v519 = vsub.f32 %v359, %v518
          %v520 = vand.u32 %v519, 4294901760
          %521 = vmatpush.msra.mxu0 %v520
          %v522 = vand.u32 %v358, 4294901760
          %v523 = vsub.f32 %v358, %v522
          %v524 = vand.u32 %v523, 4294901760
          %525 = vmatpush.msra.mxu0 %v524
          %v526 = vand.u32 %v369, 4294901760
          %527 = vmatmul.f32.gmra.mxu0 %v526
          %v528 = vpop.f32.mrf.mxu0
          %v529 = vadd.f32 %v496, %v528
          %530 = vdwg.mxu0
          %531 = vmatpush.msra.mxu0 0.0
          %532 = vmatpush.msra.mxu0 0.0
          %533 = vmatpush.msra.mxu0 0.0
          %534 = vmatpush.msra.mxu0 0.0
          %535 = vmatpush.msra.mxu0 0.0
          %536 = vmatpush.msra.mxu0 0.0
          %537 = vmatpush.msra.mxu0 0.0
          %538 = vmatpush.msra.mxu0 0.0
          %539 = vmatpush.msra.mxu0 0.0
          %540 = vmatpush.msra.mxu0 0.0
          %541 = vmatpush.msra.mxu0 0.0
          %542 = vmatpush.msra.mxu0 0.0
          %v543 = vand.u32 %v361, 4294901760
          %544 = vmatpush.msra.mxu0 %v543
          %v545 = vand.u32 %v360, 4294901760
          %546 = vmatpush.msra.mxu0 %v545
          %v547 = vand.u32 %v359, 4294901760
          %548 = vmatpush.msra.mxu0 %v547
          %v549 = vand.u32 %v358, 4294901760
          %550 = vmatpush.msra.mxu0 %v549
          %v551 = vand.u32 %v369, 4294901760
          %552 = vmatmul.f32.gmra.mxu0 %v551
          %v553 = vpop.f32.mrf.mxu0
          %v554 = vadd.f32 %v529, %v553
          %555 = vdwg.mxu0
          %v556 = vld [vmem:[#allocation9] sm:$0xff]
          %v557 = vmul.f32 %v554, %v556
          %s558 = scalar_lea.vmem [#allocation9], 8
          %v559 = vld [vmem:[%s558] sm:$0xff]
          %561 = vrot.lane.b32.xlu0 %v559, 16
          %v562 = vpop.permute.xlu0 %561
          %v564 = vmul.f32 %v554, %v562
          %566 = vrot.lane.b32.xlu0 %v564, 112
          %v567 = vpop.permute.xlu0 %566
          %v569 = vadd.f32 %v557, %v567
          %vm570 = vcmask 64512
          %571 = vst.msk [vmem:[#allocation2] sm:$0xff] %vm570, %v569
          %v572 = vld [vmem:[%s347] sm:$0xff]
          %574 = vset.pattern.permute.xlu0 0
          %575 = vperm.xlu0 %574, %v572
          %v576 = vpop.permute.xlu0 %575
          %v578 = vmul.f32 %v569, %v576
          %580 = vrot.lane.b32.xlu0 %v578, 120
          %v581 = vpop.permute.xlu0 %580
          %583 = vst.msk [vmem:[#allocation3] sm:$0xff] %vm570, %v581
        $region60: #{tpu_custom_call.1} parent=43 // pred_fallthru
          _
        %s584 = smul.u32 %s29, 8
        %s585 = scalar_lea.vmem [#allocation2], %s584
        %v586 = vld [vmem:[%s585] sm:$0xff]
        %v587 = vld [vmem:[#allocation3] sm:$0xff]
        %v588 = vld [vmem:[%s350] sm:$0x1]
        %v590 = vperm.slane %v588, 0
        %vm592 = vcmask 64512
        %v594 = vsel %vm592, %v586, 0
        %v597 = vsel %vm592, %v587, 0
        %599 = vmatpush.xpose.msra.mxu0 0.0
        %600 = vmatpush.xpose.msra.mxu0 0.0
        %601 = vmatpush.xpose.msra.mxu0 0.0
        %602 = vmatpush.xpose.msra.mxu0 0.0
        %603 = vmatpush.xpose.msra.mxu0 0.0
        %604 = vmatpush.xpose.msra.mxu0 0.0
        %605 = vmatpush.xpose.msra.mxu0 0.0
        %606 = vmatpush.xpose.msra.mxu0 0.0
        %607 = vmatpush.xpose.msra.mxu0 0.0
        %608 = vmatpush.xpose.msra.mxu0 0.0
        %609 = vmatpush.xpose.msra.mxu0 0.0
        %610 = vmatpush.xpose.msra.mxu0 0.0
        %611 = vmatpush.xpose.msra.mxu0 0.0
        %612 = vmatpush.xpose.msra.mxu0 0.0
        %613 = vmatpush.xpose.msra.mxu0 0.0
        %v614 = vand.u32 %v597, 4294901760
        %615 = vmatpush.xpose.msra.mxu0 %v614
        %v616 = vand.u32 %v594, 4294901760
        %v617 = vsub.f32 %v594, %v616
        %v618 = vand.u32 %v617, 4294901760
        %v619 = vsub.f32 %v617, %v618
        %v620 = vand.u32 %v619, 4294901760
        %621 = vmatmul.f32.gmra.mxu0 %v620
        %v622 = vpop.f32.mrf.mxu0
        %v623 = vadd.f32 %v590, %v622
        %624 = vdwg.mxu0
        %625 = vmatpush.xpose.msra.mxu0 0.0
        %626 = vmatpush.xpose.msra.mxu0 0.0
        %627 = vmatpush.xpose.msra.mxu0 0.0
        %628 = vmatpush.xpose.msra.mxu0 0.0
        %629 = vmatpush.xpose.msra.mxu0 0.0
        %630 = vmatpush.xpose.msra.mxu0 0.0
        %631 = vmatpush.xpose.msra.mxu0 0.0
        %632 = vmatpush.xpose.msra.mxu0 0.0
        %633 = vmatpush.xpose.msra.mxu0 0.0
        %634 = vmatpush.xpose.msra.mxu0 0.0
        %635 = vmatpush.xpose.msra.mxu0 0.0
        %636 = vmatpush.xpose.msra.mxu0 0.0
        %637 = vmatpush.xpose.msra.mxu0 0.0
        %638 = vmatpush.xpose.msra.mxu0 0.0
        %639 = vmatpush.xpose.msra.mxu0 0.0
        %v640 = vand.u32 %v597, 4294901760
        %v641 = vsub.f32 %v597, %v640
        %v642 = vand.u32 %v641, 4294901760
        %v643 = vsub.f32 %v641, %v642
        %v644 = vand.u32 %v643, 4294901760
        %645 = vmatpush.xpose.msra.mxu0 %v644
        %v646 = vand.u32 %v594, 4294901760
        %647 = vmatmul.f32.gmra.mxu0 %v646
        %v648 = vpop.f32.mrf.mxu0
        %v649 = vadd.f32 %v623, %v648
        %650 = vdwg.mxu0
        %651 = vmatpush.xpose.msra.mxu0 0.0
        %652 = vmatpush.xpose.msra.mxu0 0.0
        %653 = vmatpush.xpose.msra.mxu0 0.0
        %654 = vmatpush.xpose.msra.mxu0 0.0
        %655 = vmatpush.xpose.msra.mxu0 0.0
        %656 = vmatpush.xpose.msra.mxu0 0.0
        %657 = vmatpush.xpose.msra.mxu0 0.0
        %658 = vmatpush.xpose.msra.mxu0 0.0
        %659 = vmatpush.xpose.msra.mxu0 0.0
        %660 = vmatpush.xpose.msra.mxu0 0.0
        %661 = vmatpush.xpose.msra.mxu0 0.0
        %662 = vmatpush.xpose.msra.mxu0 0.0
        %663 = vmatpush.xpose.msra.mxu0 0.0
        %664 = vmatpush.xpose.msra.mxu0 0.0
        %665 = vmatpush.xpose.msra.mxu0 0.0
        %v666 = vand.u32 %v597, 4294901760
        %v667 = vsub.f32 %v597, %v666
        %668 = vmatpush.xpose.msra.mxu0 %v667
        %v669 = vand.u32 %v594, 4294901760
        %v670 = vsub.f32 %v594, %v669
        %671 = vmatmul.f32.gmra.mxu0 %v670
        %v672 = vpop.f32.mrf.mxu0
        %v673 = vadd.f32 %v649, %v672
        %674 = vdwg.mxu0
        %675 = vmatpush.xpose.msra.mxu0 0.0
        %676 = vmatpush.xpose.msra.mxu0 0.0
        %677 = vmatpush.xpose.msra.mxu0 0.0
        %678 = vmatpush.xpose.msra.mxu0 0.0
        %679 = vmatpush.xpose.msra.mxu0 0.0
        %680 = vmatpush.xpose.msra.mxu0 0.0
        %681 = vmatpush.xpose.msra.mxu0 0.0
        %682 = vmatpush.xpose.msra.mxu0 0.0
        %683 = vmatpush.xpose.msra.mxu0 0.0
        %684 = vmatpush.xpose.msra.mxu0 0.0
        %685 = vmatpush.xpose.msra.mxu0 0.0
        %686 = vmatpush.xpose.msra.mxu0 0.0
        %687 = vmatpush.xpose.msra.mxu0 0.0
        %688 = vmatpush.xpose.msra.mxu0 0.0
        %689 = vmatpush.xpose.msra.mxu0 0.0
        %v690 = vand.u32 %v597, 4294901760
        %691 = vmatpush.xpose.msra.mxu0 %v690
        %v692 = vand.u32 %v594, 4294901760
        %v693 = vsub.f32 %v594, %v692
        %v694 = vand.u32 %v693, 4294901760
        %695 = vmatmul.f32.gmra.mxu0 %v694
        %v696 = vpop.f32.mrf.mxu0
        %v697 = vadd.f32 %v673, %v696
        %698 = vdwg.mxu0
        %699 = vmatpush.xpose.msra.mxu0 0.0
        %700 = vmatpush.xpose.msra.mxu0 0.0
        %701 = vmatpush.xpose.msra.mxu0 0.0
        %702 = vmatpush.xpose.msra.mxu0 0.0
        %703 = vmatpush.xpose.msra.mxu0 0.0
        %704 = vmatpush.xpose.msra.mxu0 0.0
        %705 = vmatpush.xpose.msra.mxu0 0.0
        %706 = vmatpush.xpose.msra.mxu0 0.0
        %707 = vmatpush.xpose.msra.mxu0 0.0
        %708 = vmatpush.xpose.msra.mxu0 0.0
        %709 = vmatpush.xpose.msra.mxu0 0.0
        %710 = vmatpush.xpose.msra.mxu0 0.0
        %711 = vmatpush.xpose.msra.mxu0 0.0
        %712 = vmatpush.xpose.msra.mxu0 0.0
        %713 = vmatpush.xpose.msra.mxu0 0.0
        %v714 = vand.u32 %v597, 4294901760
        %v715 = vsub.f32 %v597, %v714
        %v716 = vand.u32 %v715, 4294901760
        %717 = vmatpush.xpose.msra.mxu0 %v716
        %v718 = vand.u32 %v594, 4294901760
        %719 = vmatmul.f32.gmra.mxu0 %v718
        %v720 = vpop.f32.mrf.mxu0
        %v721 = vadd.f32 %v697, %v720
        %722 = vdwg.mxu0
        %723 = vmatpush.xpose.msra.mxu0 0.0
        %724 = vmatpush.xpose.msra.mxu0 0.0
        %725 = vmatpush.xpose.msra.mxu0 0.0
        %726 = vmatpush.xpose.msra.mxu0 0.0
        %727 = vmatpush.xpose.msra.mxu0 0.0
        %728 = vmatpush.xpose.msra.mxu0 0.0
        %729 = vmatpush.xpose.msra.mxu0 0.0
        %730 = vmatpush.xpose.msra.mxu0 0.0
        %731 = vmatpush.xpose.msra.mxu0 0.0
        %732 = vmatpush.xpose.msra.mxu0 0.0
        %733 = vmatpush.xpose.msra.mxu0 0.0
        %734 = vmatpush.xpose.msra.mxu0 0.0
        %735 = vmatpush.xpose.msra.mxu0 0.0
        %736 = vmatpush.xpose.msra.mxu0 0.0
        %737 = vmatpush.xpose.msra.mxu0 0.0
        %v738 = vand.u32 %v597, 4294901760
        %739 = vmatpush.xpose.msra.mxu0 %v738
        %v740 = vand.u32 %v594, 4294901760
        %741 = vmatmul.f32.gmra.mxu0 %v740
        %v742 = vpop.f32.mrf.mxu0
        %v743 = vadd.f32 %v721, %v742
        %744 = vdwg.mxu0
        %v745 = vlaneseq
        %v746 = vshrl.u32 %v745, 7
        %v747 = vstv %s584
        %v748 = vadd.s32 %v746, %v747
        %v749 = vlaneseq
        %v750 = vand.u32 %v749, 127
        %vm751 = vcmp.gt.s32.totalorder %v748, %v750
        %v752 = vsub.f32 %v743, 3.5355338e+11
        %v753 = vsel %vm751, %v752, %v743
        %754 = vst.msk [vmem:[%s339] sm:$0xff] %vm592, %v753
        %s755 = sand.u32 %s194, 1
        %s756 = scalar_lea.sflag [#allocation6], %s755
        %s757 = sand.u32 %s194, 1
        %s758 = smul.addr %s757, 8
        %s759 = scalar_lea.vmem [#allocation10], %s758
        // Predicated region
        $region61: #{tpu_custom_call.1} parent=43 // pred_check
          %p760 = pneg %p204
        $region62: #{tpu_custom_call.1} parent=43 // pred_check_branch
          %762 = sbr.rel (%p760) target = $region64
        $region63: #{tpu_custom_call.1} parent=43 // pred_region
          %764 = vsyncadd %s756, 0
          %s765 = sadd.s32 %s29, %s28
          %s766 = smul.addr %s27, 4
          %s767 = sadd.s32 %s765, %s766
          %s768 = smul.addr %s767, 8
          %s769 = scalar_lea.hbm %s6, %s768
          %s771 = sshll.u32 %s759, 4
          %s772 = int_to_ptr.vmem [resolvable:$true] %s771
          %s773 = sshll.u32 %s769, 4
          %s774 = int_to_ptr.hbm [resolvable:$true] %s773
          %776 = dma.vmem_to_hbm [thread:$0]  %s772, 128, %s774, %s756
        $region64: #{tpu_custom_call.1} parent=43 // pred_fallthru
          _
      $region44: #{tpu_custom_call.1} parent=5 // pred_fallthru
        _
      %p777 = scmp.le.s32.totalorder 2, %s17
      // Predicated region
      $region65: #{tpu_custom_call.1} parent=5 // pred_check
        %p778 = pneg %p777
      $region66: #{tpu_custom_call.1} parent=5 // pred_check_branch
        %780 = sbr.rel (%p778) target = $region68
      $region67: #{tpu_custom_call.1} parent=5 // pred_region
        %s781 = ssub.s32 %s17, 2
        // Predicated region
        $region69: #{tpu_custom_call.1} parent=67 // pred_check
          %p782 = pneg %p210
        $region70: #{tpu_custom_call.1} parent=67 // pred_check_branch
          %784 = sbr.rel (%p782) target = $region72
        $region71: #{tpu_custom_call.1} parent=67 // pred_region
          %s785 = sand.u32 %s195, 1
          %s786 = scalar_lea.sflag [#allocation6], %s785
          %s787 = sand.u32 %s195, 1
          %s788 = smul.addr %s787, 8
          %s789 = scalar_lea.vmem [#allocation10], %s788
          %791 = dma.done %s786, 128
        $region72: #{tpu_custom_call.1} parent=67 // pred_fallthru
          _
      $region68: #{tpu_custom_call.1} parent=5 // pred_fallthru
        _
    $region6: #{tpu_custom_call.1} parent=1 // loop_footer
      %s21 = sadd.s32 1, %s17
    $region7: #{tpu_custom_call.1} parent=1 // loop_footer_branch
      %16 = sbr.rel target = $region3
    $region8: #{tpu_custom_call.1} parent=1 // loop_exit
      _
    %792 = vsyncpa [#allocation5], 1
    %s793 = scalar_lea.sflag [#allocation5], 1
    %794 = vsyncpa %s793, 1
    %795 = vsyncpa [#allocation8], 1
    %796 = vsyncpa [#allocation6], 1
    %s797 = scalar_lea.sflag [#allocation6], 1
    %798 = vsyncpa %s797, 1

</llo_original>
